<compile_context>
chip_gen: v7x
topology: tpu7x:2x2x1
jax: 0.10.0
libtpu: 0.0.40
codegen_flags: <defaults>
</compile_context>

<pallas_src>
import functools

import jax
import jax.numpy as jnp
from jax.experimental import pallas as pl
from jax.experimental.pallas import tpu as pltpu

_LANE = 128
_SUBLANE = 8


def _round_up(n, m):
    return ((n + m - 1) // m) * m


def _cdiv(a, b):
    return (a + b - 1) // b


def _elementwise_dtype():
    """bf16 elementwise math on v6e/v7x (bf16 VPU/EUP); f32 elsewhere (v5e)."""
    try:
        kind = jax.devices()[0].device_kind.lower()
    except Exception:
        return jnp.float32
    return jnp.bfloat16 if ("v6" in kind or "v7" in kind) else jnp.float32


def _sigmoid(z):
    # sigmoid(z) = 0.5 * tanh(0.5 * z) + 0.5 : single EUP transcendental,
    # no exp overflow path, no approximate reciprocal.
    half = jnp.asarray(0.5, z.dtype)
    return half * jnp.tanh(half * z) + half


def _mlp_kernel(x_ref, w1_ref, b1_ref, w2_ref, b2_ref, w3_ref, b3_ref, o_ref,
                *, ew_dtype):
    # bf16 MXU operands, f32 accumulation; elementwise math in ew_dtype
    # (bf16 on v6e/v7x, f32 on v5e); final layer always in f32.
    h1 = jnp.dot(x_ref[...], w1_ref[...], preferred_element_type=jnp.float32)
    h1 = _sigmoid((h1 + b1_ref[...]).astype(ew_dtype)).astype(jnp.bfloat16)
    h2 = jnp.dot(h1, w2_ref[...], preferred_element_type=jnp.float32)
    h2 = _sigmoid((h2 + b2_ref[...]).astype(ew_dtype)).astype(jnp.bfloat16)
    h3 = jnp.dot(h2, w3_ref[...], preferred_element_type=jnp.float32)
    o_ref[...] = _sigmoid(h3 + b3_ref[...]).astype(o_ref.dtype)


def prepare_params(w1, b1, w2, b2, w3, b3):
    """One-time parameter prep (hoisted out of the per-call forward path).

    Hidden dims are zero-padded to 128 lanes (lane-dense intermediates);
    the input-feature and output dims are left unpadded (full-dim block rule).
    Weights are stored bf16 (MXU-native, half the resident VMEM); biases f32.
    """
    in_f, h1_f = w1.shape
    h2_f = w2.shape[1]
    out_f = w3.shape[1]
    h1_p = _round_up(h1_f, _LANE)
    h2_p = _round_up(h2_f, _LANE)

    def pad2(a, rows, cols):
        return jnp.pad(a, ((0, rows - a.shape[0]), (0, cols - a.shape[1])))

    w1_p = pad2(w1, in_f, h1_p).astype(jnp.bfloat16)
    w2_p = pad2(w2, h1_p, h2_p).astype(jnp.bfloat16)
    w3_p = pad2(w3, h2_p, out_f).astype(jnp.bfloat16)
    b1_p = pad2(b1.reshape(1, -1), 1, h1_p).astype(jnp.float32)
    b2_p = pad2(b2.reshape(1, -1), 1, h2_p).astype(jnp.float32)
    b3_p = b3.reshape(1, -1).astype(jnp.float32)
    return (w1_p, b1_p, w2_p, b2_p, w3_p, b3_p)


def mlp_forward(x, params, *, block_batch=512):
    """Fused 3-layer MLP with sigmoid activations in a single Pallas kernel."""
    w1_p, b1_p, w2_p, b2_p, w3_p, b3_p = params
    batch, in_f = x.shape
    h1_p = w1_p.shape[1]
    h2_p = w2_p.shape[1]
    out_f = w3_p.shape[1]

    # Balanced batch tiles (no dead rows beyond sublane rounding) with at
    # least 2 grid steps when the batch allows, so v7x can shard the
    # "parallel" axis across both TensorCores.  Extra step cost on 1-TC
    # chips is ~0.35us.
    steps = max(_cdiv(batch, block_batch), 2 if batch >= 2 * _SUBLANE else 1)
    tb = _round_up(_cdiv(batch, steps), _SUBLANE)
    b_p = steps * tb

    # Per-call input prep: bf16 cast (halves the dominant HBM stream) and
    # row-padding only if the balanced tiling doesn't divide the batch.
    x_p = x.astype(jnp.bfloat16)
    if b_p != batch:
        x_p = jnp.pad(x_p, ((0, b_p - batch), (0, 0)))

    resident = lambda shape: pl.BlockSpec(shape, lambda i: (0, 0))
    kernel = functools.partial(_mlp_kernel, ew_dtype=_elementwise_dtype())

    out_p = pl.pallas_call(
        kernel,
        out_shape=jax.ShapeDtypeStruct((b_p, out_f), jnp.float32),
        grid=(steps,),
        in_specs=[
            pl.BlockSpec((tb, in_f), lambda i: (i, 0)),  # x tile (pipelined)
            resident((in_f, h1_p)),                      # w1 (VMEM-resident)
            resident((1, h1_p)),                         # b1
            resident((h1_p, h2_p)),                      # w2
            resident((1, h2_p)),                         # b2
            resident((h2_p, out_f)),                     # w3
            resident((1, out_f)),                        # b3
        ],
        out_specs=pl.BlockSpec((tb, out_f), lambda i: (i, 0)),
        compiler_params=pltpu.CompilerParams(
            dimension_semantics=("parallel",),
            vmem_limit_bytes=32 * 1024 * 1024,
        ),
    )(x_p, w1_p, b1_p, w2_p, b2_p, w3_p, b3_p)

    return out_p if b_p == batch else out_p[:batch]


def init_linear_params(key, in_features, out_features):
    """Mimics nn.Linear default init U(-1/sqrt(in), 1/sqrt(in)).

    Weight returned already transposed to (in_features, out_features)."""
    kw, kb = jax.random.split(key)
    bound = 1.0 / (in_features ** 0.5)
    w = jax.random.uniform(
        kw, (in_features, out_features), jnp.float32, -bound, bound)
    b = jax.random.uniform(
        kb, (1, out_features), jnp.float32, -bound, bound)
    return w, b


def reference_forward(x, w1, b1, w2, b2, w3, b3):
    h1 = jax.nn.sigmoid(x @ w1 + b1)
    h2 = jax.nn.sigmoid(h1 @ w2 + b2)
    return jax.nn.sigmoid(h2 @ w3 + b3)


if __name__ == "__main__":
    # Shapes consistent with Net(input, hidden1, hidden2, output).
    # batch=384 -> 2 balanced grid steps of 192 rows (no dead-row padding).
    batch = 384
    input_size = 64
    hidden1_size = 32
    hidden2_size = 32
    output_size = 16

    key = jax.random.PRNGKey(0)
    kx, k1, k2, k3 = jax.random.split(key, 4)

    x = jax.random.normal(kx, (batch, input_size), jnp.float32)
    w1, b1 = init_linear_params(k1, input_size, hidden1_size)
    w2, b2 = init_linear_params(k2, hidden1_size, hidden2_size)
    w3, b3 = init_linear_params(k3, hidden2_size, output_size)

    # One-time parameter prep (pad + bf16 cast), kept out of the forward path.
    params = jax.tree.map(jax.block_until_ready,
                          prepare_params(w1, b1, w2, b2, w3, b3))

    fwd = jax.jit(functools.partial(mlp_forward, block_batch=512))
    out = jax.block_until_ready(fwd(x, params))

    ref = reference_forward(x, w1, b1, w2, b2, w3, b3)
    assert out.shape == (batch, output_size)
    # bf16 MXU operands / bf16 elementwise on v6e+ vs. pure-f32 reference.
    max_err = float(jnp.max(jnp.abs(out - ref)))
    assert max_err < 2e-2, f"max abs error {max_err}"

    print("KERNEL_OK")
</pallas_src>

<mosaic_0001>
module attributes {stable_mosaic.version = 11 : i64} {
  func.func @_mlp_kernel(%arg0: i32, %arg1: memref<192x64xbf16, #tpu.memory_space<vmem>>, %arg2: memref<64x128xbf16, #tpu.memory_space<vmem>>, %arg3: memref<1x128xf32, #tpu.memory_space<vmem>>, %arg4: memref<128x128xbf16, #tpu.memory_space<vmem>>, %arg5: memref<1x128xf32, #tpu.memory_space<vmem>>, %arg6: memref<128x16xbf16, #tpu.memory_space<vmem>>, %arg7: memref<1x16xf32, #tpu.memory_space<vmem>>, %arg8: memref<192x16xf32, #tpu.memory_space<vmem>>) attributes {dimension_semantics = [#tpu.dimension_semantics<parallel>], iteration_bounds = array<i64: 2>, scalar_prefetch = 0 : i64, scratch_operands = 0 : i64, tpu.core_type = #tpu.core_type<tc>, window_params = [{transform_indices = @transform_0, window_bounds = array<i64: 192, 64>}, {pipeline_mode = #tpu.pipeline_mode<synchronous>, transform_indices = @transform_1, window_bounds = array<i64: 64, 128>}, {pipeline_mode = #tpu.pipeline_mode<synchronous>, transform_indices = @transform_2, window_bounds = array<i64: 1, 128>}, {pipeline_mode = #tpu.pipeline_mode<synchronous>, transform_indices = @transform_3, window_bounds = array<i64: 128, 128>}, {pipeline_mode = #tpu.pipeline_mode<synchronous>, transform_indices = @transform_4, window_bounds = array<i64: 1, 128>}, {pipeline_mode = #tpu.pipeline_mode<synchronous>, transform_indices = @transform_5, window_bounds = array<i64: 128, 16>}, {pipeline_mode = #tpu.pipeline_mode<synchronous>, transform_indices = @transform_6, window_bounds = array<i64: 1, 16>}, {transform_indices = @transform_7, window_bounds = array<i64: 192, 16>}]} {
    %c0 = arith.constant 0 : index
    %c0_0 = arith.constant 0 : index
    %0 = vector.load %arg1[%c0, %c0_0] : memref<192x64xbf16, #tpu.memory_space<vmem>>, vector<192x64xbf16>
    %c0_1 = arith.constant 0 : index
    %c0_2 = arith.constant 0 : index
    %1 = vector.load %arg2[%c0_1, %c0_2] : memref<64x128xbf16, #tpu.memory_space<vmem>>, vector<64x128xbf16>
    %cst = arith.constant dense<0.000000e+00> : vector<192x128xf32>
    %2 = tpu.matmul %0, %1, %cst {dimension_numbers = #tpu.dot_dimension_numbers<[1], [0], [0], [1], [0, 0, 1, 1], [], []>} : vector<192x64xbf16>, vector<64x128xbf16>, vector<192x128xf32> -> vector<192x128xf32>
    %c0_3 = arith.constant 0 : index
    %c0_4 = arith.constant 0 : index
    %3 = vector.load %arg3[%c0_3, %c0_4] : memref<1x128xf32, #tpu.memory_space<vmem>>, vector<1x128xf32>
    %4 = vector.broadcast %3 : vector<1x128xf32> to vector<192x128xf32>
    %5 = arith.addf %2, %4 : vector<192x128xf32>
    %cst_5 = arith.constant 5.000000e-01 : f32
    %6 = vector.broadcast %cst_5 : f32 to vector<192x128xf32>
    %7 = arith.mulf %6, %5 : vector<192x128xf32>
    %8 = math.tanh %7 : vector<192x128xf32>
    %cst_6 = arith.constant 5.000000e-01 : f32
    %9 = vector.broadcast %cst_6 : f32 to vector<192x128xf32>
    %10 = arith.mulf %9, %8 : vector<192x128xf32>
    %cst_7 = arith.constant 5.000000e-01 : f32
    %11 = vector.broadcast %cst_7 : f32 to vector<192x128xf32>
    %12 = arith.addf %10, %11 : vector<192x128xf32>
    %13 = arith.truncf %12 : vector<192x128xf32> to vector<192x128xbf16>
    %c0_8 = arith.constant 0 : index
    %c0_9 = arith.constant 0 : index
    %14 = vector.load %arg4[%c0_8, %c0_9] : memref<128x128xbf16, #tpu.memory_space<vmem>>, vector<128x128xbf16>
    %cst_10 = arith.constant dense<0.000000e+00> : vector<192x128xf32>
    %15 = tpu.matmul %13, %14, %cst_10 {dimension_numbers = #tpu.dot_dimension_numbers<[1], [0], [0], [1], [0, 0, 1, 1], [], []>} : vector<192x128xbf16>, vector<128x128xbf16>, vector<192x128xf32> -> vector<192x128xf32>
    %c0_11 = arith.constant 0 : index
    %c0_12 = arith.constant 0 : index
    %16 = vector.load %arg5[%c0_11, %c0_12] : memref<1x128xf32, #tpu.memory_space<vmem>>, vector<1x128xf32>
    %17 = vector.broadcast %16 : vector<1x128xf32> to vector<192x128xf32>
    %18 = arith.addf %15, %17 : vector<192x128xf32>
    %cst_13 = arith.constant 5.000000e-01 : f32
    %19 = vector.broadcast %cst_13 : f32 to vector<192x128xf32>
    %20 = arith.mulf %19, %18 : vector<192x128xf32>
    %21 = math.tanh %20 : vector<192x128xf32>
    %cst_14 = arith.constant 5.000000e-01 : f32
    %22 = vector.broadcast %cst_14 : f32 to vector<192x128xf32>
    %23 = arith.mulf %22, %21 : vector<192x128xf32>
    %cst_15 = arith.constant 5.000000e-01 : f32
    %24 = vector.broadcast %cst_15 : f32 to vector<192x128xf32>
    %25 = arith.addf %23, %24 : vector<192x128xf32>
    %26 = arith.truncf %25 : vector<192x128xf32> to vector<192x128xbf16>
    %c0_16 = arith.constant 0 : index
    %c0_17 = arith.constant 0 : index
    %27 = vector.load %arg6[%c0_16, %c0_17] : memref<128x16xbf16, #tpu.memory_space<vmem>>, vector<128x16xbf16>
    %cst_18 = arith.constant dense<0.000000e+00> : vector<192x16xf32>
    %28 = tpu.matmul %26, %27, %cst_18 {dimension_numbers = #tpu.dot_dimension_numbers<[1], [0], [0], [1], [0, 0, 1, 1], [], []>} : vector<192x128xbf16>, vector<128x16xbf16>, vector<192x16xf32> -> vector<192x16xf32>
    %c0_19 = arith.constant 0 : index
    %c0_20 = arith.constant 0 : index
    %29 = vector.load %arg7[%c0_19, %c0_20] : memref<1x16xf32, #tpu.memory_space<vmem>>, vector<1x16xf32>
    %30 = vector.broadcast %29 : vector<1x16xf32> to vector<192x16xf32>
    %31 = arith.addf %28, %30 : vector<192x16xf32>
    %cst_21 = arith.constant 5.000000e-01 : f32
    %32 = vector.broadcast %cst_21 : f32 to vector<192x16xf32>
    %33 = arith.mulf %32, %31 : vector<192x16xf32>
    %34 = math.tanh %33 : vector<192x16xf32>
    %cst_22 = arith.constant 5.000000e-01 : f32
    %35 = vector.broadcast %cst_22 : f32 to vector<192x16xf32>
    %36 = arith.mulf %35, %34 : vector<192x16xf32>
    %cst_23 = arith.constant 5.000000e-01 : f32
    %37 = vector.broadcast %cst_23 : f32 to vector<192x16xf32>
    %38 = arith.addf %36, %37 : vector<192x16xf32>
    %c0_24 = arith.constant 0 : index
    %c0_25 = arith.constant 0 : index
    %39 = vector.load %arg8[%c0_24, %c0_25] : memref<192x16xf32, #tpu.memory_space<vmem>>, vector<192x16xf32>
    tpu.vector_store %arg8[%c0_24, %c0_25], %38 {strides = array<i32>} : memref<192x16xf32, #tpu.memory_space<vmem>>, vector<192x16xf32>,
    return
  }
  func.func @transform_0(%arg0: i32) -> (i32, i32) {
    %c0_i32 = arith.constant 0 : i32
    %c0_i32_0 = arith.constant 0 : i32
    return %arg0, %c0_i32 : i32, i32
  }
  func.func @transform_1(%arg0: i32) -> (i32, i32) {
    %c0_i32 = arith.constant 0 : i32
    %c0_i32_0 = arith.constant 0 : i32
    %c0_i32_1 = arith.constant 0 : i32
    return %c0_i32, %c0_i32_0 : i32, i32
  }
  func.func @transform_2(%arg0: i32) -> (i32, i32) {
    %c0_i32 = arith.constant 0 : i32
    %c0_i32_0 = arith.constant 0 : i32
    %c0_i32_1 = arith.constant 0 : i32
    return %c0_i32, %c0_i32_0 : i32, i32
  }
  func.func @transform_3(%arg0: i32) -> (i32, i32) {
    %c0_i32 = arith.constant 0 : i32
    %c0_i32_0 = arith.constant 0 : i32
    %c0_i32_1 = arith.constant 0 : i32
    return %c0_i32, %c0_i32_0 : i32, i32
  }
  func.func @transform_4(%arg0: i32) -> (i32, i32) {
    %c0_i32 = arith.constant 0 : i32
    %c0_i32_0 = arith.constant 0 : i32
    %c0_i32_1 = arith.constant 0 : i32
    return %c0_i32, %c0_i32_0 : i32, i32
  }
  func.func @transform_5(%arg0: i32) -> (i32, i32) {
    %c0_i32 = arith.constant 0 : i32
    %c0_i32_0 = arith.constant 0 : i32
    %c0_i32_1 = arith.constant 0 : i32
    return %c0_i32, %c0_i32_0 : i32, i32
  }
  func.func @transform_6(%arg0: i32) -> (i32, i32) {
    %c0_i32 = arith.constant 0 : i32
    %c0_i32_0 = arith.constant 0 : i32
    %c0_i32_1 = arith.constant 0 : i32
    return %c0_i32, %c0_i32_0 : i32, i32
  }
  func.func @transform_7(%arg0: i32) -> (i32, i32) {
    %c0_i32 = arith.constant 0 : i32
    %c0_i32_0 = arith.constant 0 : i32
    return %arg0, %c0_i32 : i32, i32
  }
}

</mosaic_0001>

<llo_original>
// kernel: mlp_forward.1
$region0: #{mlp_forward.1}
  #allocation0 [shape = 'u32[]', space=smem, size = 0x4, offset = 0x4, fixed_abs, tag = 'smem constant byte address 0x4 - core index']
  #allocation1 [shape = 'u32[144,128]{1,0:T(1,128)}', space=vmem, size = 0x12000, scoped, tag = 'internal scratch']
  %s0 = inlined_call_operand.vmem [shape: bf16[384,64], index: 0, kind: input, shape index: {}]
  %s1 = inlined_call_operand.vmem [shape: bf16[64,128], index: 1, kind: input, shape index: {}]
  %s2 = inlined_call_operand.vmem [shape: f32[1,128], index: 2, kind: input, shape index: {}]
  %s3 = inlined_call_operand.vmem [shape: bf16[128,128], index: 3, kind: input, shape index: {}]
  %s4 = inlined_call_operand.vmem [shape: f32[1,128], index: 4, kind: input, shape index: {}]
  %s5 = inlined_call_operand.vmem [shape: bf16[128,16], index: 5, kind: input, shape index: {}]
  %s6 = inlined_call_operand.vmem [shape: f32[1,16], index: 6, kind: input, shape index: {}]
  %s7 = inlined_call_operand.vmem [shape: f32[384,16], index: 7, kind: output, shape index: {}]
  %s8 = sld [smem:[#allocation0]]
  $region61: #{mlp_forward.1} parent=0
    _
  %s10 = ssub.s32 1, %s8
  %s11 = scalar_select 0, %s10, %s8
  loop: start=0, step=1, limit=4
  $region2: #{mlp_forward.1} parent=0 // loop_pre_header
    _
  $region3: #{mlp_forward.1} parent=0 // loop_header
    %s13 = sphi 0, %s17
    %p14 = scmp.ge.s32.totalorder %s13, 4
    %s23 = sphi 0, %s25
    %s26 = sphi 0, %s23
    %s27 = sphi 0, %s26
    %s43 = sphi 0, %s27
    %s47 = sphi 0, %s47
    %s49 = sphi 0, %s47
    %s50 = sphi 0, %s49
    %s64 = sphi 0, %s50
    %s68 = sphi 0, %s68
    %s70 = sphi 0, %s68
    %s71 = sphi 0, %s70
    %s85 = sphi 0, %s71
    %s89 = sphi 0, %s89
    %s91 = sphi 0, %s89
    %s92 = sphi 0, %s91
    %s106 = sphi 0, %s92
    %s110 = sphi 0, %s110
    %s112 = sphi 0, %s110
    %s113 = sphi 0, %s112
    %s127 = sphi 0, %s113
    %s131 = sphi 0, %s131
    %s133 = sphi 0, %s131
    %s134 = sphi 0, %s133
    %s148 = sphi 0, %s134
    %s152 = sphi 0, %s152
    %s154 = sphi 0, %s152
    %s155 = sphi 0, %s154
    %s169 = sphi 0, %s155
    %s175 = sphi 0, %s177
    %s178 = sphi 0, %s175
    %s179 = sphi 0, %s178
    %s195 = sphi 0, %s179
  $region4: #{mlp_forward.1} parent=0 // loop_header_branch
    %16 = sbr.rel (%p14) target = $region8
  $region5: #{mlp_forward.1} parent=0 // loop_body
    %s18 = ssub.s32 %s13, 1
    %s19 = ssub.s32 %s13, 2
    %s20 = sadd.s32 %s13, 1
    %s21 = ssub.s32 %s13, %s20
    %p22 = scmp.eq.s32.totalorder %s21, 0
    %s24 = sadd.s32 %s23, 1
    %s25 = scalar_select %p22, %s23, %s24
    %p28 = pneg %p22
    %p29 = scmp.eq.s32.totalorder %s13, 1
    %p30 = por %p28, %p29
    %p31 = scmp.ne.s32.totalorder %s23, %s26
    %p32 = scmp.eq.s32.totalorder %s13, 0
    %p33 = por %p31, %p32
    %p34 = scmp.ne.s32.totalorder %s23, %s26
    %p35 = scmp.eq.s32.totalorder %s18, 1
    %p36 = por %p34, %p35
    %p37 = scmp.ne.s32.totalorder %s26, %s27
    %p38 = scmp.eq.s32.totalorder %s18, 0
    %p39 = por %p37, %p38
    %p40 = scmp.ne.s32.totalorder %s26, %s27
    %p41 = scmp.eq.s32.totalorder %s19, 1
    %p42 = por %p40, %p41
    %p44 = scmp.ne.s32.totalorder %s27, %s43
    %p45 = scmp.eq.s32.totalorder %s19, 0
    %p46 = por %p44, %p45
    %s48 = sadd.s32 %s47, 1
    %p51 = scmp.eq.s32.totalorder %s13, 1
    %p52 = scmp.ne.s32.totalorder %s47, %s49
    %p53 = scmp.eq.s32.totalorder %s13, 0
    %p54 = por %p52, %p53
    %p55 = scmp.ne.s32.totalorder %s47, %s49
    %p56 = scmp.eq.s32.totalorder %s18, 1
    %p57 = por %p55, %p56
    %p58 = scmp.ne.s32.totalorder %s49, %s50
    %p59 = scmp.eq.s32.totalorder %s18, 0
    %p60 = por %p58, %p59
    %p61 = scmp.ne.s32.totalorder %s49, %s50
    %p62 = scmp.eq.s32.totalorder %s19, 1
    %p63 = por %p61, %p62
    %p65 = scmp.ne.s32.totalorder %s50, %s64
    %p66 = scmp.eq.s32.totalorder %s19, 0
    %p67 = por %p65, %p66
    %s69 = sadd.s32 %s68, 1
    %p72 = scmp.eq.s32.totalorder %s13, 1
    %p73 = scmp.ne.s32.totalorder %s68, %s70
    %p74 = scmp.eq.s32.totalorder %s13, 0
    %p75 = por %p73, %p74
    %p76 = scmp.ne.s32.totalorder %s68, %s70
    %p77 = scmp.eq.s32.totalorder %s18, 1
    %p78 = por %p76, %p77
    %p79 = scmp.ne.s32.totalorder %s70, %s71
    %p80 = scmp.eq.s32.totalorder %s18, 0
    %p81 = por %p79, %p80
    %p82 = scmp.ne.s32.totalorder %s70, %s71
    %p83 = scmp.eq.s32.totalorder %s19, 1
    %p84 = por %p82, %p83
    %p86 = scmp.ne.s32.totalorder %s71, %s85
    %p87 = scmp.eq.s32.totalorder %s19, 0
    %p88 = por %p86, %p87
    %s90 = sadd.s32 %s89, 1
    %p93 = scmp.eq.s32.totalorder %s13, 1
    %p94 = scmp.ne.s32.totalorder %s89, %s91
    %p95 = scmp.eq.s32.totalorder %s13, 0
    %p96 = por %p94, %p95
    %p97 = scmp.ne.s32.totalorder %s89, %s91
    %p98 = scmp.eq.s32.totalorder %s18, 1
    %p99 = por %p97, %p98
    %p100 = scmp.ne.s32.totalorder %s91, %s92
    %p101 = scmp.eq.s32.totalorder %s18, 0
    %p102 = por %p100, %p101
    %p103 = scmp.ne.s32.totalorder %s91, %s92
    %p104 = scmp.eq.s32.totalorder %s19, 1
    %p105 = por %p103, %p104
    %p107 = scmp.ne.s32.totalorder %s92, %s106
    %p108 = scmp.eq.s32.totalorder %s19, 0
    %p109 = por %p107, %p108
    %s111 = sadd.s32 %s110, 1
    %p114 = scmp.eq.s32.totalorder %s13, 1
    %p115 = scmp.ne.s32.totalorder %s110, %s112
    %p116 = scmp.eq.s32.totalorder %s13, 0
    %p117 = por %p115, %p116
    %p118 = scmp.ne.s32.totalorder %s110, %s112
    %p119 = scmp.eq.s32.totalorder %s18, 1
    %p120 = por %p118, %p119
    %p121 = scmp.ne.s32.totalorder %s112, %s113
    %p122 = scmp.eq.s32.totalorder %s18, 0
    %p123 = por %p121, %p122
    %p124 = scmp.ne.s32.totalorder %s112, %s113
    %p125 = scmp.eq.s32.totalorder %s19, 1
    %p126 = por %p124, %p125
    %p128 = scmp.ne.s32.totalorder %s113, %s127
    %p129 = scmp.eq.s32.totalorder %s19, 0
    %p130 = por %p128, %p129
    %s132 = sadd.s32 %s131, 1
    %p135 = scmp.eq.s32.totalorder %s13, 1
    %p136 = scmp.ne.s32.totalorder %s131, %s133
    %p137 = scmp.eq.s32.totalorder %s13, 0
    %p138 = por %p136, %p137
    %p139 = scmp.ne.s32.totalorder %s131, %s133
    %p140 = scmp.eq.s32.totalorder %s18, 1
    %p141 = por %p139, %p140
    %p142 = scmp.ne.s32.totalorder %s133, %s134
    %p143 = scmp.eq.s32.totalorder %s18, 0
    %p144 = por %p142, %p143
    %p145 = scmp.ne.s32.totalorder %s133, %s134
    %p146 = scmp.eq.s32.totalorder %s19, 1
    %p147 = por %p145, %p146
    %p149 = scmp.ne.s32.totalorder %s134, %s148
    %p150 = scmp.eq.s32.totalorder %s19, 0
    %p151 = por %p149, %p150
    %s153 = sadd.s32 %s152, 1
    %p156 = scmp.eq.s32.totalorder %s13, 1
    %p157 = scmp.ne.s32.totalorder %s152, %s154
    %p158 = scmp.eq.s32.totalorder %s13, 0
    %p159 = por %p157, %p158
    %p160 = scmp.ne.s32.totalorder %s152, %s154
    %p161 = scmp.eq.s32.totalorder %s18, 1
    %p162 = por %p160, %p161
    %p163 = scmp.ne.s32.totalorder %s154, %s155
    %p164 = scmp.eq.s32.totalorder %s18, 0
    %p165 = por %p163, %p164
    %p166 = scmp.ne.s32.totalorder %s154, %s155
    %p167 = scmp.eq.s32.totalorder %s19, 1
    %p168 = por %p166, %p167
    %p170 = scmp.ne.s32.totalorder %s155, %s169
    %p171 = scmp.eq.s32.totalorder %s19, 0
    %p172 = por %p170, %p171
    %s173 = ssub.s32 %s13, %s20
    %p174 = scmp.eq.s32.totalorder %s173, 0
    %s176 = sadd.s32 %s175, 1
    %s177 = scalar_select %p174, %s175, %s176
    %p180 = pneg %p174
    %p181 = scmp.eq.s32.totalorder %s13, 1
    %p182 = por %p180, %p181
    %p183 = scmp.ne.s32.totalorder %s175, %s178
    %p184 = scmp.eq.s32.totalorder %s13, 0
    %p185 = por %p183, %p184
    %p186 = scmp.ne.s32.totalorder %s175, %s178
    %p187 = scmp.eq.s32.totalorder %s18, 1
    %p188 = por %p186, %p187
    %p189 = scmp.ne.s32.totalorder %s178, %s179
    %p190 = scmp.eq.s32.totalorder %s18, 0
    %p191 = por %p189, %p190
    %p192 = scmp.ne.s32.totalorder %s178, %s179
    %p193 = scmp.eq.s32.totalorder %s19, 1
    %p194 = por %p192, %p193
    %p196 = scmp.ne.s32.totalorder %s179, %s195
    %p197 = scmp.eq.s32.totalorder %s19, 0
    %p198 = por %p196, %p197
    %p199 = scmp.le.s32.totalorder 1, %s13
    %p200 = scmp.lt.s32.totalorder %s13, 3
    %p201 = pnand %p199, %p200
    %p202 = pneg %p201
    // Predicated region
    $region9: #{mlp_forward.1} parent=5 // pred_check
      _
    $region10: #{mlp_forward.1} parent=5 // pred_check_branch
      %204 = sbr.rel (%p201) target = $region12
    $region11: #{mlp_forward.1} parent=5 // pred_region
      %s205 = ssub.s32 %s13, 1
      // Predicated region
      $region13: #{mlp_forward.1} parent=11 // pred_check
        %p206 = pneg %p60
      $region14: #{mlp_forward.1} parent=11 // pred_check_branch
        %208 = sbr.rel (%p206) target = $region16
      $region15: #{mlp_forward.1} parent=11 // pred_region
        _
      $region16: #{mlp_forward.1} parent=11 // pred_fallthru
        _
      // Predicated region
      $region17: #{mlp_forward.1} parent=11 // pred_check
        %p209 = pneg %p81
      $region18: #{mlp_forward.1} parent=11 // pred_check_branch
        %211 = sbr.rel (%p209) target = $region20
      $region19: #{mlp_forward.1} parent=11 // pred_region
        _
      $region20: #{mlp_forward.1} parent=11 // pred_fallthru
        _
      // Predicated region
      $region21: #{mlp_forward.1} parent=11 // pred_check
        %p212 = pneg %p102
      $region22: #{mlp_forward.1} parent=11 // pred_check_branch
        %214 = sbr.rel (%p212) target = $region24
      $region23: #{mlp_forward.1} parent=11 // pred_region
        _
      $region24: #{mlp_forward.1} parent=11 // pred_fallthru
        _
      // Predicated region
      $region25: #{mlp_forward.1} parent=11 // pred_check
        %p215 = pneg %p123
      $region26: #{mlp_forward.1} parent=11 // pred_check_branch
        %217 = sbr.rel (%p215) target = $region28
      $region27: #{mlp_forward.1} parent=11 // pred_region
        _
      $region28: #{mlp_forward.1} parent=11 // pred_fallthru
        _
      // Predicated region
      $region29: #{mlp_forward.1} parent=11 // pred_check
        %p218 = pneg %p144
      $region30: #{mlp_forward.1} parent=11 // pred_check_branch
        %220 = sbr.rel (%p218) target = $region32
      $region31: #{mlp_forward.1} parent=11 // pred_region
        _
      $region32: #{mlp_forward.1} parent=11 // pred_fallthru
        _
      // Predicated region
      $region33: #{mlp_forward.1} parent=11 // pred_check
        %p221 = pneg %p165
      $region34: #{mlp_forward.1} parent=11 // pred_check_branch
        %223 = sbr.rel (%p221) target = $region36
      $region35: #{mlp_forward.1} parent=11 // pred_region
        _
      $region36: #{mlp_forward.1} parent=11 // pred_fallthru
        _
    $region12: #{mlp_forward.1} parent=5 // pred_fallthru
      _
    %p224 = scmp.lt.s32.totalorder %s13, 2
    // Predicated region
    $region37: #{mlp_forward.1} parent=5 // pred_check
      %p225 = pneg %p224
    $region38: #{mlp_forward.1} parent=5 // pred_check_branch
      %227 = sbr.rel (%p225) target = $region40
    $region39: #{mlp_forward.1} parent=5 // pred_region
      // Predicated region
      $region41: #{mlp_forward.1} parent=39 // pred_check
        %p228 = pneg %p33
      $region42: #{mlp_forward.1} parent=39 // pred_check_branch
        %230 = sbr.rel (%p228) target = $region44
      $region43: #{mlp_forward.1} parent=39 // pred_region
        %s231 = smul.u32 24, %s13
        %p232 = scmp.lt.s32.totalorder %s231, 47
        %s233 = scalar_select %p232, %s231, 47
        %s234 = smul.addr %s233, 4
        %s235 = scalar_lea.vmem %s0, %s234
        %s236 = smul.u32 24, %s13
      $region44: #{mlp_forward.1} parent=39 // pred_fallthru
        _
    $region40: #{mlp_forward.1} parent=5 // pred_fallthru
      _
    %p237 = scmp.le.s32.totalorder 1, %s13
    %p238 = scmp.lt.s32.totalorder %s13, 3
    %p239 = pnand %p237, %p238
    %p240 = pneg %p239
    // Predicated region
    $region45: #{mlp_forward.1} parent=5 // pred_check
      _
    $region46: #{mlp_forward.1} parent=5 // pred_check_branch
      %242 = sbr.rel (%p239) target = $region48
    $region47: #{mlp_forward.1} parent=5 // pred_region
      %s243 = ssub.s32 %s13, 1
      %s244 = smul.u32 24, %s18
      %p245 = scmp.lt.s32.totalorder %s244, 47
      %s246 = scalar_select %p245, %s244, 47
      %s247 = smul.addr %s246, 4
      %s248 = scalar_lea.vmem %s0, %s247
      %p249 = pneg %p39
      %p250 = pneg %p36
      %p251 = pneg %p60
      %p252 = pneg %p57
      %p253 = pneg %p81
      %p254 = pneg %p78
      %p255 = pneg %p102
      %p256 = pneg %p99
      %p257 = pneg %p123
      %p258 = pneg %p120
      %p259 = pneg %p144
      %p260 = pneg %p141
      %p261 = pneg %p165
      %p262 = pneg %p162
      %p263 = pneg %p191
      %p264 = pneg %p188
      %s265 = smul.u32 24, %s18
      %p266 = scmp.lt.s32.totalorder %s265, 47
      %s267 = scalar_select %p266, %s265, 47
      %s268 = smul.addr %s267, 8
      %s269 = scalar_lea.vmem %s7, %s268
      %s270 = smul.u32 24, %s18
      %p271 = scmp.lt.s32.totalorder %s270, 47
      %s272 = scalar_select %p271, %s270, 47
      %s273 = smul.addr %s272, 4
      %s274 = scalar_lea.vmem %s0, %s273
      %s275 = smul.u32 24, %s18
      %s276 = smul.u32 24, %s18
      %p277 = scmp.lt.s32.totalorder %s276, 47
      %s278 = scalar_select %p277, %s276, 47
      %s279 = smul.addr %s278, 8
      %s280 = scalar_lea.vmem %s7, %s279
      %s281 = smul.u32 24, %s18
      %v283 = vld [vmem:[%s274] sm:$0xf]
      %v284 = vld [vmem:[%s274 + $0x4] sm:$0xf]
      %v285 = vld [vmem:[%s274 + $0x8] sm:$0xf]
      %v286 = vld [vmem:[%s274 + $0xc] sm:$0xf]
      %v287 = vld [vmem:[%s274 + $0x10] sm:$0xf]
      %v288 = vld [vmem:[%s274 + $0x14] sm:$0xf]
      %v289 = vld [vmem:[%s274 + $0x18] sm:$0xf]
      %v290 = vld [vmem:[%s274 + $0x1c] sm:$0xf]
      %v291 = vld [vmem:[%s274 + $0x20] sm:$0xf]
      %v292 = vld [vmem:[%s274 + $0x24] sm:$0xf]
      %v293 = vld [vmem:[%s274 + $0x28] sm:$0xf]
      %v294 = vld [vmem:[%s274 + $0x2c] sm:$0xf]
      %v295 = vld [vmem:[%s274 + $0x30] sm:$0xf]
      %v296 = vld [vmem:[%s274 + $0x34] sm:$0xf]
      %v297 = vld [vmem:[%s274 + $0x38] sm:$0xf]
      %v298 = vld [vmem:[%s274 + $0x3c] sm:$0xf]
      %v299 = vld [vmem:[%s274 + $0x40] sm:$0xf]
      %v300 = vld [vmem:[%s274 + $0x44] sm:$0xf]
      %v301 = vld [vmem:[%s274 + $0x48] sm:$0xf]
      %v302 = vld [vmem:[%s274 + $0x4c] sm:$0xf]
      %v303 = vld [vmem:[%s274 + $0x50] sm:$0xf]
      %v304 = vld [vmem:[%s274 + $0x54] sm:$0xf]
      %v305 = vld [vmem:[%s274 + $0x58] sm:$0xf]
      %v306 = vld [vmem:[%s274 + $0x5c] sm:$0xf]
      %v307 = vld [vmem:[%s1] sm:$0xf]
      %v308 = vld [vmem:[%s1 + $0x4] sm:$0xf]
      %v309 = vld [vmem:[%s1 + $0x8] sm:$0xf]
      %v310 = vld [vmem:[%s1 + $0xc] sm:$0xf]
      %v311 = vld [vmem:[%s1 + $0x10] sm:$0xf]
      %v312 = vld [vmem:[%s1 + $0x14] sm:$0xf]
      %v313 = vld [vmem:[%s1 + $0x18] sm:$0xf]
      %v314 = vld [vmem:[%s1 + $0x1c] sm:$0xf]
      %v315 = vld [vmem:[%s2] sm:$0x1]
      %v317 = vlaneseq
      %v318 = vshrl.u32 %v317, 7
      %v319 = vsub.s32 0, %v318
      %v320 = vrot.slane %v315, %v319
      %v346 = vunpack.c.l.b16 %v283
      %v347 = vunpack.c.l.b16 %v284
      %v348 = vunpack.c.l.b16 %v285
      %v349 = vunpack.c.l.b16 %v286
      %v350 = vunpack.c.l.b16 %v287
      %v351 = vunpack.c.l.b16 %v288
      %v352 = vunpack.c.l.b16 %v289
      %v353 = vunpack.c.l.b16 %v290
      %v354 = vunpack.c.l.b16 %v291
      %v355 = vunpack.c.l.b16 %v292
      %v356 = vunpack.c.l.b16 %v293
      %v357 = vunpack.c.l.b16 %v294
      %v358 = vunpack.c.l.b16 %v295
      %v359 = vunpack.c.l.b16 %v296
      %v360 = vunpack.c.l.b16 %v297
      %v361 = vunpack.c.l.b16 %v298
      %v362 = vunpack.c.l.b16 %v299
      %v363 = vunpack.c.l.b16 %v300
      %v364 = vunpack.c.l.b16 %v301
      %v365 = vunpack.c.l.b16 %v302
      %v366 = vunpack.c.l.b16 %v303
      %v367 = vunpack.c.l.b16 %v304
      %v368 = vunpack.c.l.b16 %v305
      %v369 = vunpack.c.l.b16 %v306
      %v370 = vpack.c.b16 %v347, %v346
      %v371 = vpack.c.b16 %v349, %v348
      %v372 = vpack.c.b16 %v351, %v350
      %v373 = vpack.c.b16 %v353, %v352
      %v374 = vpack.c.b16 %v355, %v354
      %v375 = vpack.c.b16 %v357, %v356
      %v376 = vpack.c.b16 %v359, %v358
      %v377 = vpack.c.b16 %v361, %v360
      %v378 = vpack.c.b16 %v363, %v362
      %v379 = vpack.c.b16 %v365, %v364
      %v380 = vpack.c.b16 %v367, %v366
      %v381 = vpack.c.b16 %v369, %v368
      %v390 = vunpack.c.l.b16 %v307
      %v391 = vunpack.c.l.b16 %v308
      %v392 = vunpack.c.l.b16 %v309
      %v393 = vunpack.c.l.b16 %v310
      %v394 = vunpack.c.l.b16 %v311
      %v395 = vunpack.c.l.b16 %v312
      %v396 = vunpack.c.l.b16 %v313
      %v397 = vunpack.c.l.b16 %v314
      %v398 = vpack.c.b16 %v391, %v390
      %v399 = vpack.c.b16 %v393, %v392
      %v400 = vpack.c.b16 %v395, %v394
      %v401 = vpack.c.b16 %v397, %v396
      %vm406 = vcmask 523264
      %v408 = vsel %vm406, %v370, 0
      %v411 = vsel %vm406, %v371, 0
      %v414 = vsel %vm406, %v372, 0
      %v417 = vsel %vm406, %v373, 0
      %v420 = vsel %vm406, %v374, 0
      %v423 = vsel %vm406, %v375, 0
      %v426 = vsel %vm406, %v376, 0
      %v429 = vsel %vm406, %v377, 0
      %v432 = vsel %vm406, %v378, 0
      %v435 = vsel %vm406, %v379, 0
      %v438 = vsel %vm406, %v380, 0
      %v441 = vsel %vm406, %v381, 0
      %443 = vmatprep.subr.bf16.mxu0 0
      %444 = vmatpush1.bf16.msra.mxu0 %v398
      %445 = vmatprep.subr.bf16.mxu0 0
      %446 = vmatpush1.bf16.msra.mxu0 %v399
      %447 = vmatprep.subr.bf16.mxu0 0
      %448 = vmatpush1.bf16.msra.mxu0 %v400
      %449 = vmatprep.subr.bf16.mxu0 0
      %450 = vmatpush1.bf16.msra.mxu0 %v401
      %451 = vmatprep.subr.bf16.mxu0 0
      %452 = vmatpush1.bf16.msra.mxu0 0
      %453 = vmatprep.subr.bf16.mxu0 0
      %454 = vmatpush1.bf16.msra.mxu0 0
      %455 = vmatprep.subr.bf16.mxu0 0
      %456 = vmatpush1.bf16.msra.mxu0 0
      %457 = vmatprep.subr.bf16.mxu0 0
      %458 = vmatpush1.bf16.msra.mxu0 0
      %459 = vmatprep.subr.bf16.mxu0 0
      %460 = vmatpush1.bf16.msra.mxu0 0
      %461 = vmatprep.subr.bf16.mxu0 0
      %462 = vmatpush1.bf16.msra.mxu0 0
      %463 = vmatprep.subr.bf16.mxu0 0
      %464 = vmatpush1.bf16.msra.mxu0 0
      %465 = vmatprep.subr.bf16.mxu0 0
      %466 = vmatpush1.bf16.msra.mxu0 0
      %467 = vmatprep.subr.bf16.mxu0 0
      %468 = vmatpush1.bf16.msra.mxu0 0
      %469 = vmatprep.subr.bf16.mxu0 0
      %470 = vmatpush1.bf16.msra.mxu0 0
      %471 = vmatprep.subr.bf16.mxu0 0
      %472 = vmatpush1.bf16.msra.mxu0 0
      %473 = vmatprep.subr.bf16.mxu0 0
      %474 = vmatpush1.bf16.msra.mxu0 0
      %475 = vmatprep.mubr.bf16.mxu0 0
      %476 = vmatmul.mubr.bf16.gmra.mrb[0].mxu0 %v408
      %v477 = vpop.f32.mrb[0].mxu0
      %v478 = vadd.f32 %v320, %v477
      %v479 = vpop.f32.mrb[0].mxu0
      %v480 = vpop.f32.mrb[0].mxu0
      %v481 = vadd.f32 %v320, %v480
      %v482 = vpop.f32.mrb[0].mxu0
      %483 = vmatprep.mubr.bf16.mxu0 0
      %484 = vmatmul.mubr.bf16.gmra.mrb[0].mxu0 %v411
      %v485 = vpop.f32.mrb[0].mxu0
      %v486 = vadd.f32 %v320, %v485
      %v487 = vpop.f32.mrb[0].mxu0
      %v488 = vpop.f32.mrb[0].mxu0
      %v489 = vadd.f32 %v320, %v488
      %v490 = vpop.f32.mrb[0].mxu0
      %491 = vmatprep.mubr.bf16.mxu0 0
      %492 = vmatmul.mubr.bf16.gmra.mrb[0].mxu0 %v414
      %v493 = vpop.f32.mrb[0].mxu0
      %v494 = vadd.f32 %v320, %v493
      %v495 = vpop.f32.mrb[0].mxu0
      %v496 = vpop.f32.mrb[0].mxu0
      %v497 = vadd.f32 %v320, %v496
      %v498 = vpop.f32.mrb[0].mxu0
      %499 = vmatprep.mubr.bf16.mxu0 0
      %500 = vmatmul.mubr.bf16.gmra.mrb[0].mxu0 %v417
      %v501 = vpop.f32.mrb[0].mxu0
      %v502 = vadd.f32 %v320, %v501
      %v503 = vpop.f32.mrb[0].mxu0
      %v504 = vpop.f32.mrb[0].mxu0
      %v505 = vadd.f32 %v320, %v504
      %v506 = vpop.f32.mrb[0].mxu0
      %507 = vmatprep.mubr.bf16.mxu0 0
      %508 = vmatmul.mubr.bf16.gmra.mrb[0].mxu0 %v420
      %v509 = vpop.f32.mrb[0].mxu0
      %v510 = vadd.f32 %v320, %v509
      %v511 = vpop.f32.mrb[0].mxu0
      %v512 = vpop.f32.mrb[0].mxu0
      %v513 = vadd.f32 %v320, %v512
      %v514 = vpop.f32.mrb[0].mxu0
      %515 = vmatprep.mubr.bf16.mxu0 0
      %516 = vmatmul.mubr.bf16.gmra.mrb[0].mxu0 %v423
      %v517 = vpop.f32.mrb[0].mxu0
      %v518 = vadd.f32 %v320, %v517
      %v519 = vpop.f32.mrb[0].mxu0
      %v520 = vpop.f32.mrb[0].mxu0
      %v521 = vadd.f32 %v320, %v520
      %v522 = vpop.f32.mrb[0].mxu0
      %523 = vmatprep.mubr.bf16.mxu0 0
      %524 = vmatmul.mubr.bf16.gmra.mrb[0].mxu0 %v426
      %v525 = vpop.f32.mrb[0].mxu0
      %v526 = vadd.f32 %v320, %v525
      %v527 = vpop.f32.mrb[0].mxu0
      %v528 = vpop.f32.mrb[0].mxu0
      %v529 = vadd.f32 %v320, %v528
      %v530 = vpop.f32.mrb[0].mxu0
      %531 = vmatprep.mubr.bf16.mxu0 0
      %532 = vmatmul.mubr.bf16.gmra.mrb[0].mxu0 %v429
      %v533 = vpop.f32.mrb[0].mxu0
      %v534 = vadd.f32 %v320, %v533
      %v535 = vpop.f32.mrb[0].mxu0
      %v536 = vpop.f32.mrb[0].mxu0
      %v537 = vadd.f32 %v320, %v536
      %v538 = vpop.f32.mrb[0].mxu0
      %539 = vmatprep.mubr.bf16.mxu0 0
      %540 = vmatmul.mubr.bf16.gmra.mrb[0].mxu0 %v432
      %v541 = vpop.f32.mrb[0].mxu0
      %v542 = vadd.f32 %v320, %v541
      %v543 = vpop.f32.mrb[0].mxu0
      %v544 = vpop.f32.mrb[0].mxu0
      %v545 = vadd.f32 %v320, %v544
      %v546 = vpop.f32.mrb[0].mxu0
      %547 = vmatprep.mubr.bf16.mxu0 0
      %548 = vmatmul.mubr.bf16.gmra.mrb[0].mxu0 %v435
      %v549 = vpop.f32.mrb[0].mxu0
      %v550 = vadd.f32 %v320, %v549
      %v551 = vpop.f32.mrb[0].mxu0
      %v552 = vpop.f32.mrb[0].mxu0
      %v553 = vadd.f32 %v320, %v552
      %v554 = vpop.f32.mrb[0].mxu0
      %555 = vmatprep.mubr.bf16.mxu0 0
      %556 = vmatmul.mubr.bf16.gmra.mrb[0].mxu0 %v438
      %v557 = vpop.f32.mrb[0].mxu0
      %v558 = vadd.f32 %v320, %v557
      %v559 = vpop.f32.mrb[0].mxu0
      %v560 = vpop.f32.mrb[0].mxu0
      %v561 = vadd.f32 %v320, %v560
      %v562 = vpop.f32.mrb[0].mxu0
      %563 = vmatprep.mubr.bf16.mxu0 0
      %564 = vmatmul.mubr.bf16.gmra.mrb[0].mxu0 %v441
      %v565 = vpop.f32.mrb[0].mxu0
      %v566 = vadd.f32 %v320, %v565
      %v567 = vpop.f32.mrb[0].mxu0
      %v568 = vpop.f32.mrb[0].mxu0
      %v569 = vadd.f32 %v320, %v568
      %v570 = vpop.f32.mrb[0].mxu0
      %571 = vdwg.mxu0
      %v572 = vmul.f32 %v478, 0.5
      %v573 = vmul.f32 %v481, 0.5
      %v574 = vmul.f32 %v486, 0.5
      %v575 = vmul.f32 %v489, 0.5
      %v576 = vmul.f32 %v494, 0.5
      %v577 = vmul.f32 %v497, 0.5
      %v578 = vmul.f32 %v502, 0.5
      %v579 = vmul.f32 %v505, 0.5
      %v580 = vmul.f32 %v510, 0.5
      %v581 = vmul.f32 %v513, 0.5
      %v582 = vmul.f32 %v518, 0.5
      %v583 = vmul.f32 %v521, 0.5
      %v584 = vmul.f32 %v526, 0.5
      %v585 = vmul.f32 %v529, 0.5
      %v586 = vmul.f32 %v534, 0.5
      %v587 = vmul.f32 %v537, 0.5
      %v588 = vmul.f32 %v542, 0.5
      %v589 = vmul.f32 %v545, 0.5
      %v590 = vmul.f32 %v550, 0.5
      %v591 = vmul.f32 %v553, 0.5
      %v592 = vmul.f32 %v558, 0.5
      %v593 = vmul.f32 %v561, 0.5
      %v594 = vmul.f32 %v566, 0.5
      %v595 = vmul.f32 %v569, 0.5
      %v596 = vtanh.pop %v572
      %v597 = vtanh.pop %v573
      %v598 = vtanh.pop %v574
      %v599 = vtanh.pop %v575
      %v600 = vtanh.pop %v576
      %v601 = vtanh.pop %v577
      %v602 = vtanh.pop %v578
      %v603 = vtanh.pop %v579
      %v604 = vtanh.pop %v580
      %v605 = vtanh.pop %v581
      %v606 = vtanh.pop %v582
      %v607 = vtanh.pop %v583
      %v608 = vtanh.pop %v584
      %v609 = vtanh.pop %v585
      %v610 = vtanh.pop %v586
      %v611 = vtanh.pop %v587
      %v612 = vtanh.pop %v588
      %v613 = vtanh.pop %v589
      %v614 = vtanh.pop %v590
      %v615 = vtanh.pop %v591
      %v616 = vtanh.pop %v592
      %v617 = vtanh.pop %v593
      %v618 = vtanh.pop %v594
      %v619 = vtanh.pop %v595
      %v620 = vmul.f32 %v596, 0.5
      %v621 = vmul.f32 %v597, 0.5
      %v622 = vmul.f32 %v598, 0.5
      %v623 = vmul.f32 %v599, 0.5
      %v624 = vmul.f32 %v600, 0.5
      %v625 = vmul.f32 %v601, 0.5
      %v626 = vmul.f32 %v602, 0.5
      %v627 = vmul.f32 %v603, 0.5
      %v628 = vmul.f32 %v604, 0.5
      %v629 = vmul.f32 %v605, 0.5
      %v630 = vmul.f32 %v606, 0.5
      %v631 = vmul.f32 %v607, 0.5
      %v632 = vmul.f32 %v608, 0.5
      %v633 = vmul.f32 %v609, 0.5
      %v634 = vmul.f32 %v610, 0.5
      %v635 = vmul.f32 %v611, 0.5
      %v636 = vmul.f32 %v612, 0.5
      %v637 = vmul.f32 %v613, 0.5
      %v638 = vmul.f32 %v614, 0.5
      %v639 = vmul.f32 %v615, 0.5
      %v640 = vmul.f32 %v616, 0.5
      %v641 = vmul.f32 %v617, 0.5
      %v642 = vmul.f32 %v618, 0.5
      %v643 = vmul.f32 %v619, 0.5
      %v644 = vadd.f32 %v620, 0.5
      %v645 = vadd.f32 %v621, 0.5
      %v646 = vadd.f32 %v622, 0.5
      %v647 = vadd.f32 %v623, 0.5
      %v648 = vadd.f32 %v624, 0.5
      %v649 = vadd.f32 %v625, 0.5
      %v650 = vadd.f32 %v626, 0.5
      %v651 = vadd.f32 %v627, 0.5
      %v652 = vadd.f32 %v628, 0.5
      %v653 = vadd.f32 %v629, 0.5
      %v654 = vadd.f32 %v630, 0.5
      %v655 = vadd.f32 %v631, 0.5
      %v656 = vadd.f32 %v632, 0.5
      %v657 = vadd.f32 %v633, 0.5
      %v658 = vadd.f32 %v634, 0.5
      %v659 = vadd.f32 %v635, 0.5
      %v660 = vadd.f32 %v636, 0.5
      %v661 = vadd.f32 %v637, 0.5
      %v662 = vadd.f32 %v638, 0.5
      %v663 = vadd.f32 %v639, 0.5
      %v664 = vadd.f32 %v640, 0.5
      %v665 = vadd.f32 %v641, 0.5
      %v666 = vadd.f32 %v642, 0.5
      %v667 = vadd.f32 %v643, 0.5
      %v668 = vpack.c.bf16 %v645, %v644
      %v669 = vpack.c.bf16 %v647, %v646
      %v670 = vpack.c.bf16 %v649, %v648
      %v671 = vpack.c.bf16 %v651, %v650
      %v672 = vpack.c.bf16 %v653, %v652
      %v673 = vpack.c.bf16 %v655, %v654
      %v674 = vpack.c.bf16 %v657, %v656
      %v675 = vpack.c.bf16 %v659, %v658
      %v676 = vpack.c.bf16 %v661, %v660
      %v677 = vpack.c.bf16 %v663, %v662
      %v678 = vpack.c.bf16 %v665, %v664
      %v679 = vpack.c.bf16 %v667, %v666
      %v680 = vld [vmem:[%s3] sm:$0xf]
      %v681 = vld [vmem:[%s3 + $0x4] sm:$0xf]
      %v682 = vld [vmem:[%s3 + $0x8] sm:$0xf]
      %v683 = vld [vmem:[%s3 + $0xc] sm:$0xf]
      %v684 = vld [vmem:[%s3 + $0x10] sm:$0xf]
      %v685 = vld [vmem:[%s3 + $0x14] sm:$0xf]
      %v686 = vld [vmem:[%s3 + $0x18] sm:$0xf]
      %v687 = vld [vmem:[%s3 + $0x1c] sm:$0xf]
      %v688 = vld [vmem:[%s3 + $0x20] sm:$0xf]
      %v689 = vld [vmem:[%s3 + $0x24] sm:$0xf]
      %v690 = vld [vmem:[%s3 + $0x28] sm:$0xf]
      %v691 = vld [vmem:[%s3 + $0x2c] sm:$0xf]
      %v692 = vld [vmem:[%s3 + $0x30] sm:$0xf]
      %v693 = vld [vmem:[%s3 + $0x34] sm:$0xf]
      %v694 = vld [vmem:[%s3 + $0x38] sm:$0xf]
      %v695 = vld [vmem:[%s3 + $0x3c] sm:$0xf]
      %v696 = vld [vmem:[%s4] sm:$0x1]
      %v698 = vlaneseq
      %v699 = vshrl.u32 %v698, 7
      %v700 = vsub.s32 0, %v699
      %v701 = vrot.slane %v696, %v700
      %v719 = vunpack.c.l.b16 %v680
      %v720 = vunpack.c.l.b16 %v681
      %v721 = vunpack.c.l.b16 %v682
      %v722 = vunpack.c.l.b16 %v683
      %v723 = vunpack.c.l.b16 %v684
      %v724 = vunpack.c.l.b16 %v685
      %v725 = vunpack.c.l.b16 %v686
      %v726 = vunpack.c.l.b16 %v687
      %v727 = vunpack.c.l.b16 %v688
      %v728 = vunpack.c.l.b16 %v689
      %v729 = vunpack.c.l.b16 %v690
      %v730 = vunpack.c.l.b16 %v691
      %v731 = vunpack.c.l.b16 %v692
      %v732 = vunpack.c.l.b16 %v693
      %v733 = vunpack.c.l.b16 %v694
      %v734 = vunpack.c.l.b16 %v695
      %v735 = vpack.c.b16 %v720, %v719
      %v736 = vpack.c.b16 %v722, %v721
      %v737 = vpack.c.b16 %v724, %v723
      %v738 = vpack.c.b16 %v726, %v725
      %v739 = vpack.c.b16 %v728, %v727
      %v740 = vpack.c.b16 %v730, %v729
      %v741 = vpack.c.b16 %v732, %v731
      %v742 = vpack.c.b16 %v734, %v733
      %751 = vmatprep.subr.bf16.mxu0 0
      %752 = vmatpush1.bf16.msra.mxu0 %v735
      %753 = vmatprep.subr.bf16.mxu0 0
      %754 = vmatpush1.bf16.msra.mxu0 %v736
      %755 = vmatprep.subr.bf16.mxu0 0
      %756 = vmatpush1.bf16.msra.mxu0 %v737
      %757 = vmatprep.subr.bf16.mxu0 0
      %758 = vmatpush1.bf16.msra.mxu0 %v738
      %759 = vmatprep.subr.bf16.mxu0 0
      %760 = vmatpush1.bf16.msra.mxu0 %v739
      %761 = vmatprep.subr.bf16.mxu0 0
      %762 = vmatpush1.bf16.msra.mxu0 %v740
      %763 = vmatprep.subr.bf16.mxu0 0
      %764 = vmatpush1.bf16.msra.mxu0 %v741
      %765 = vmatprep.subr.bf16.mxu0 0
      %766 = vmatpush1.bf16.msra.mxu0 %v742
      %767 = vmatprep.subr.bf16.mxu0 0
      %768 = vmatpush1.bf16.msra.mxu0 0
      %769 = vmatprep.subr.bf16.mxu0 0
      %770 = vmatpush1.bf16.msra.mxu0 0
      %771 = vmatprep.subr.bf16.mxu0 0
      %772 = vmatpush1.bf16.msra.mxu0 0
      %773 = vmatprep.subr.bf16.mxu0 0
      %774 = vmatpush1.bf16.msra.mxu0 0
      %775 = vmatprep.subr.bf16.mxu0 0
      %776 = vmatpush1.bf16.msra.mxu0 0
      %777 = vmatprep.subr.bf16.mxu0 0
      %778 = vmatpush1.bf16.msra.mxu0 0
      %779 = vmatprep.subr.bf16.mxu0 0
      %780 = vmatpush1.bf16.msra.mxu0 0
      %781 = vmatprep.subr.bf16.mxu0 0
      %782 = vmatpush1.bf16.msra.mxu0 0
      %783 = vmatprep.mubr.bf16.mxu0 0
      %784 = vmatmul.mubr.bf16.gmra.mrb[0].mxu0 %v668
      %v785 = vpop.f32.mrb[0].mxu0
      %v786 = vadd.f32 %v701, %v785
      %v787 = vpop.f32.mrb[0].mxu0
      %v788 = vpop.f32.mrb[0].mxu0
      %v789 = vadd.f32 %v701, %v788
      %v790 = vpop.f32.mrb[0].mxu0
      %791 = vmatprep.mubr.bf16.mxu0 0
      %792 = vmatmul.mubr.bf16.gmra.mrb[0].mxu0 %v669
      %v793 = vpop.f32.mrb[0].mxu0
      %v794 = vadd.f32 %v701, %v793
      %v795 = vpop.f32.mrb[0].mxu0
      %v796 = vpop.f32.mrb[0].mxu0
      %v797 = vadd.f32 %v701, %v796
      %v798 = vpop.f32.mrb[0].mxu0
      %799 = vmatprep.mubr.bf16.mxu0 0
      %800 = vmatmul.mubr.bf16.gmra.mrb[0].mxu0 %v670
      %v801 = vpop.f32.mrb[0].mxu0
      %v802 = vadd.f32 %v701, %v801
      %v803 = vpop.f32.mrb[0].mxu0
      %v804 = vpop.f32.mrb[0].mxu0
      %v805 = vadd.f32 %v701, %v804
      %v806 = vpop.f32.mrb[0].mxu0
      %807 = vmatprep.mubr.bf16.mxu0 0
      %808 = vmatmul.mubr.bf16.gmra.mrb[0].mxu0 %v671
      %v809 = vpop.f32.mrb[0].mxu0
      %v810 = vadd.f32 %v701, %v809
      %v811 = vpop.f32.mrb[0].mxu0
      %v812 = vpop.f32.mrb[0].mxu0
      %v813 = vadd.f32 %v701, %v812
      %v814 = vpop.f32.mrb[0].mxu0
      %815 = vmatprep.mubr.bf16.mxu0 0
      %816 = vmatmul.mubr.bf16.gmra.mrb[0].mxu0 %v672
      %v817 = vpop.f32.mrb[0].mxu0
      %v818 = vadd.f32 %v701, %v817
      %v819 = vpop.f32.mrb[0].mxu0
      %v820 = vpop.f32.mrb[0].mxu0
      %v821 = vadd.f32 %v701, %v820
      %v822 = vpop.f32.mrb[0].mxu0
      %823 = vmatprep.mubr.bf16.mxu0 0
      %824 = vmatmul.mubr.bf16.gmra.mrb[0].mxu0 %v673
      %v825 = vpop.f32.mrb[0].mxu0
      %v826 = vadd.f32 %v701, %v825
      %v827 = vpop.f32.mrb[0].mxu0
      %v828 = vpop.f32.mrb[0].mxu0
      %v829 = vadd.f32 %v701, %v828
      %v830 = vpop.f32.mrb[0].mxu0
      %831 = vmatprep.mubr.bf16.mxu0 0
      %832 = vmatmul.mubr.bf16.gmra.mrb[0].mxu0 %v674
      %v833 = vpop.f32.mrb[0].mxu0
      %v834 = vadd.f32 %v701, %v833
      %v835 = vpop.f32.mrb[0].mxu0
      %v836 = vpop.f32.mrb[0].mxu0
      %v837 = vadd.f32 %v701, %v836
      %v838 = vpop.f32.mrb[0].mxu0
      %839 = vmatprep.mubr.bf16.mxu0 0
      %840 = vmatmul.mubr.bf16.gmra.mrb[0].mxu0 %v675
      %v841 = vpop.f32.mrb[0].mxu0
      %v842 = vadd.f32 %v701, %v841
      %v843 = vpop.f32.mrb[0].mxu0
      %v844 = vpop.f32.mrb[0].mxu0
      %v845 = vadd.f32 %v701, %v844
      %v846 = vpop.f32.mrb[0].mxu0
      %847 = vmatprep.mubr.bf16.mxu0 0
      %848 = vmatmul.mubr.bf16.gmra.mrb[0].mxu0 %v676
      %v849 = vpop.f32.mrb[0].mxu0
      %v850 = vadd.f32 %v701, %v849
      %v851 = vpop.f32.mrb[0].mxu0
      %v852 = vpop.f32.mrb[0].mxu0
      %v853 = vadd.f32 %v701, %v852
      %v854 = vpop.f32.mrb[0].mxu0
      %855 = vmatprep.mubr.bf16.mxu0 0
      %856 = vmatmul.mubr.bf16.gmra.mrb[0].mxu0 %v677
      %v857 = vpop.f32.mrb[0].mxu0
      %v858 = vadd.f32 %v701, %v857
      %v859 = vpop.f32.mrb[0].mxu0
      %v860 = vpop.f32.mrb[0].mxu0
      %v861 = vadd.f32 %v701, %v860
      %v862 = vpop.f32.mrb[0].mxu0
      %863 = vmatprep.mubr.bf16.mxu0 0
      %864 = vmatmul.mubr.bf16.gmra.mrb[0].mxu0 %v678
      %v865 = vpop.f32.mrb[0].mxu0
      %v866 = vadd.f32 %v701, %v865
      %v867 = vpop.f32.mrb[0].mxu0
      %v868 = vpop.f32.mrb[0].mxu0
      %v869 = vadd.f32 %v701, %v868
      %v870 = vpop.f32.mrb[0].mxu0
      %871 = vmatprep.mubr.bf16.mxu0 0
      %872 = vmatmul.mubr.bf16.gmra.mrb[0].mxu0 %v679
      %v873 = vpop.f32.mrb[0].mxu0
      %v874 = vadd.f32 %v701, %v873
      %v875 = vpop.f32.mrb[0].mxu0
      %v876 = vpop.f32.mrb[0].mxu0
      %v877 = vadd.f32 %v701, %v876
      %v878 = vpop.f32.mrb[0].mxu0
      %879 = vdwg.mxu0
      %v880 = vmul.f32 %v786, 0.5
      %v881 = vmul.f32 %v789, 0.5
      %v882 = vmul.f32 %v794, 0.5
      %v883 = vmul.f32 %v797, 0.5
      %v884 = vmul.f32 %v802, 0.5
      %v885 = vmul.f32 %v805, 0.5
      %v886 = vmul.f32 %v810, 0.5
      %v887 = vmul.f32 %v813, 0.5
      %v888 = vmul.f32 %v818, 0.5
      %v889 = vmul.f32 %v821, 0.5
      %v890 = vmul.f32 %v826, 0.5
      %v891 = vmul.f32 %v829, 0.5
      %v892 = vmul.f32 %v834, 0.5
      %v893 = vmul.f32 %v837, 0.5
      %v894 = vmul.f32 %v842, 0.5
      %v895 = vmul.f32 %v845, 0.5
      %v896 = vmul.f32 %v850, 0.5
      %v897 = vmul.f32 %v853, 0.5
      %v898 = vmul.f32 %v858, 0.5
      %v899 = vmul.f32 %v861, 0.5
      %v900 = vmul.f32 %v866, 0.5
      %v901 = vmul.f32 %v869, 0.5
      %v902 = vmul.f32 %v874, 0.5
      %v903 = vmul.f32 %v877, 0.5
      %v904 = vtanh.pop %v880
      %v905 = vtanh.pop %v881
      %v906 = vtanh.pop %v882
      %v907 = vtanh.pop %v883
      %v908 = vtanh.pop %v884
      %v909 = vtanh.pop %v885
      %v910 = vtanh.pop %v886
      %v911 = vtanh.pop %v887
      %v912 = vtanh.pop %v888
      %v913 = vtanh.pop %v889
      %v914 = vtanh.pop %v890
      %v915 = vtanh.pop %v891
      %v916 = vtanh.pop %v892
      %v917 = vtanh.pop %v893
      %v918 = vtanh.pop %v894
      %v919 = vtanh.pop %v895
      %v920 = vtanh.pop %v896
      %v921 = vtanh.pop %v897
      %v922 = vtanh.pop %v898
      %v923 = vtanh.pop %v899
      %v924 = vtanh.pop %v900
      %v925 = vtanh.pop %v901
      %v926 = vtanh.pop %v902
      %v927 = vtanh.pop %v903
      %v928 = vmul.f32 %v904, 0.5
      %v929 = vmul.f32 %v905, 0.5
      %v930 = vmul.f32 %v906, 0.5
      %v931 = vmul.f32 %v907, 0.5
      %v932 = vmul.f32 %v908, 0.5
      %v933 = vmul.f32 %v909, 0.5
      %v934 = vmul.f32 %v910, 0.5
      %v935 = vmul.f32 %v911, 0.5
      %v936 = vmul.f32 %v912, 0.5
      %v937 = vmul.f32 %v913, 0.5
      %v938 = vmul.f32 %v914, 0.5
      %v939 = vmul.f32 %v915, 0.5
      %v940 = vmul.f32 %v916, 0.5
      %v941 = vmul.f32 %v917, 0.5
      %v942 = vmul.f32 %v918, 0.5
      %v943 = vmul.f32 %v919, 0.5
      %v944 = vmul.f32 %v920, 0.5
      %v945 = vmul.f32 %v921, 0.5
      %v946 = vmul.f32 %v922, 0.5
      %v947 = vmul.f32 %v923, 0.5
      %v948 = vmul.f32 %v924, 0.5
      %v949 = vmul.f32 %v925, 0.5
      %v950 = vmul.f32 %v926, 0.5
      %v951 = vmul.f32 %v927, 0.5
      %v952 = vadd.f32 %v928, 0.5
      %v953 = vadd.f32 %v929, 0.5
      %v954 = vadd.f32 %v930, 0.5
      %v955 = vadd.f32 %v931, 0.5
      %v956 = vadd.f32 %v932, 0.5
      %v957 = vadd.f32 %v933, 0.5
      %v958 = vadd.f32 %v934, 0.5
      %v959 = vadd.f32 %v935, 0.5
      %v960 = vadd.f32 %v936, 0.5
      %v961 = vadd.f32 %v937, 0.5
      %v962 = vadd.f32 %v938, 0.5
      %v963 = vadd.f32 %v939, 0.5
      %v964 = vadd.f32 %v940, 0.5
      %v965 = vadd.f32 %v941, 0.5
      %v966 = vadd.f32 %v942, 0.5
      %v967 = vadd.f32 %v943, 0.5
      %v968 = vadd.f32 %v944, 0.5
      %v969 = vadd.f32 %v945, 0.5
      %v970 = vadd.f32 %v946, 0.5
      %v971 = vadd.f32 %v947, 0.5
      %v972 = vadd.f32 %v948, 0.5
      %v973 = vadd.f32 %v949, 0.5
      %v974 = vadd.f32 %v950, 0.5
      %v975 = vadd.f32 %v951, 0.5
      %v976 = vpack.c.bf16 %v953, %v952
      %v977 = vpack.c.bf16 %v955, %v954
      %v978 = vpack.c.bf16 %v957, %v956
      %v979 = vpack.c.bf16 %v959, %v958
      %v980 = vpack.c.bf16 %v961, %v960
      %v981 = vpack.c.bf16 %v963, %v962
      %v982 = vpack.c.bf16 %v965, %v964
      %v983 = vpack.c.bf16 %v967, %v966
      %v984 = vpack.c.bf16 %v969, %v968
      %v985 = vpack.c.bf16 %v971, %v970
      %v986 = vpack.c.bf16 %v973, %v972
      %v987 = vpack.c.bf16 %v975, %v974
      %v988 = vld [vmem:[%s5] sm:$0xf]
      %v989 = vld [vmem:[%s5 + $0x4] sm:$0xf]
      %v990 = vld [vmem:[%s5 + $0x8] sm:$0xf]
      %v991 = vld [vmem:[%s5 + $0xc] sm:$0xf]
      %v992 = vld [vmem:[%s5 + $0x10] sm:$0xf]
      %v993 = vld [vmem:[%s5 + $0x14] sm:$0xf]
      %v994 = vld [vmem:[%s5 + $0x18] sm:$0xf]
      %v995 = vld [vmem:[%s5 + $0x1c] sm:$0xf]
      %v996 = vld [vmem:[%s5 + $0x20] sm:$0xf]
      %v997 = vld [vmem:[%s5 + $0x24] sm:$0xf]
      %v998 = vld [vmem:[%s5 + $0x28] sm:$0xf]
      %v999 = vld [vmem:[%s5 + $0x2c] sm:$0xf]
      %v1000 = vld [vmem:[%s5 + $0x30] sm:$0xf]
      %v1001 = vld [vmem:[%s5 + $0x34] sm:$0xf]
      %v1002 = vld [vmem:[%s5 + $0x38] sm:$0xf]
      %v1003 = vld [vmem:[%s5 + $0x3c] sm:$0xf]
      %v1004 = vld [vmem:[%s6] sm:$0x1]
      %v1006 = vlaneseq
      %v1007 = vshrl.u32 %v1006, 7
      %v1008 = vsub.s32 0, %v1007
      %v1009 = vrot.slane %v1004, %v1008
      %v1027 = vunpack.c.l.b16 %v988
      %v1028 = vunpack.c.l.b16 %v989
      %v1029 = vunpack.c.l.b16 %v990
      %v1030 = vunpack.c.l.b16 %v991
      %v1031 = vunpack.c.l.b16 %v992
      %v1032 = vunpack.c.l.b16 %v993
      %v1033 = vunpack.c.l.b16 %v994
      %v1034 = vunpack.c.l.b16 %v995
      %v1035 = vunpack.c.l.b16 %v996
      %v1036 = vunpack.c.l.b16 %v997
      %v1037 = vunpack.c.l.b16 %v998
      %v1038 = vunpack.c.l.b16 %v999
      %v1039 = vunpack.c.l.b16 %v1000
      %v1040 = vunpack.c.l.b16 %v1001
      %v1041 = vunpack.c.l.b16 %v1002
      %v1042 = vunpack.c.l.b16 %v1003
      %v1043 = vpack.c.b16 %v1028, %v1027
      %v1044 = vpack.c.b16 %v1030, %v1029
      %v1045 = vpack.c.b16 %v1032, %v1031
      %v1046 = vpack.c.b16 %v1034, %v1033
      %v1047 = vpack.c.b16 %v1036, %v1035
      %v1048 = vpack.c.b16 %v1038, %v1037
      %v1049 = vpack.c.b16 %v1040, %v1039
      %v1050 = vpack.c.b16 %v1042, %v1041
      %1059 = vmatprep.subr.bf16.mxu0 0
      %1060 = vmatpush1.bf16.msra.mxu0 %v1043
      %1061 = vmatprep.subr.bf16.mxu0 0
      %1062 = vmatpush1.bf16.msra.mxu0 %v1044
      %1063 = vmatprep.subr.bf16.mxu0 0
      %1064 = vmatpush1.bf16.msra.mxu0 %v1045
      %1065 = vmatprep.subr.bf16.mxu0 0
      %1066 = vmatpush1.bf16.msra.mxu0 %v1046
      %1067 = vmatprep.subr.bf16.mxu0 0
      %1068 = vmatpush1.bf16.msra.mxu0 %v1047
      %1069 = vmatprep.subr.bf16.mxu0 0
      %1070 = vmatpush1.bf16.msra.mxu0 %v1048
      %1071 = vmatprep.subr.bf16.mxu0 0
      %1072 = vmatpush1.bf16.msra.mxu0 %v1049
      %1073 = vmatprep.subr.bf16.mxu0 0
      %1074 = vmatpush1.bf16.msra.mxu0 %v1050
      %1075 = vmatprep.subr.bf16.mxu0 0
      %1076 = vmatpush1.bf16.msra.mxu0 0
      %1077 = vmatprep.subr.bf16.mxu0 0
      %1078 = vmatpush1.bf16.msra.mxu0 0
      %1079 = vmatprep.subr.bf16.mxu0 0
      %1080 = vmatpush1.bf16.msra.mxu0 0
      %1081 = vmatprep.subr.bf16.mxu0 0
      %1082 = vmatpush1.bf16.msra.mxu0 0
      %1083 = vmatprep.subr.bf16.mxu0 0
      %1084 = vmatpush1.bf16.msra.mxu0 0
      %1085 = vmatprep.subr.bf16.mxu0 0
      %1086 = vmatpush1.bf16.msra.mxu0 0
      %1087 = vmatprep.subr.bf16.mxu0 0
      %1088 = vmatpush1.bf16.msra.mxu0 0
      %1089 = vmatprep.subr.bf16.mxu0 0
      %1090 = vmatpush1.bf16.msra.mxu0 0
      %1091 = vmatprep.mubr.bf16.mxu0 0
      %1092 = vmatmul.mubr.bf16.gmra.mrb[0].mxu0 %v976
      %v1093 = vpop.f32.mrb[0].mxu0
      %v1094 = vadd.f32 %v1009, %v1093
      %v1095 = vpop.f32.mrb[0].mxu0
      %v1096 = vpop.f32.mrb[0].mxu0
      %v1097 = vadd.f32 %v1009, %v1096
      %v1098 = vpop.f32.mrb[0].mxu0
      %1099 = vmatprep.mubr.bf16.mxu0 0
      %1100 = vmatmul.mubr.bf16.gmra.mrb[0].mxu0 %v977
      %v1101 = vpop.f32.mrb[0].mxu0
      %v1102 = vadd.f32 %v1009, %v1101
      %v1103 = vpop.f32.mrb[0].mxu0
      %v1104 = vpop.f32.mrb[0].mxu0
      %v1105 = vadd.f32 %v1009, %v1104
      %v1106 = vpop.f32.mrb[0].mxu0
      %1107 = vmatprep.mubr.bf16.mxu0 0
      %1108 = vmatmul.mubr.bf16.gmra.mrb[0].mxu0 %v978
      %v1109 = vpop.f32.mrb[0].mxu0
      %v1110 = vadd.f32 %v1009, %v1109
      %v1111 = vpop.f32.mrb[0].mxu0
      %v1112 = vpop.f32.mrb[0].mxu0
      %v1113 = vadd.f32 %v1009, %v1112
      %v1114 = vpop.f32.mrb[0].mxu0
      %1115 = vmatprep.mubr.bf16.mxu0 0
      %1116 = vmatmul.mubr.bf16.gmra.mrb[0].mxu0 %v979
      %v1117 = vpop.f32.mrb[0].mxu0
      %v1118 = vadd.f32 %v1009, %v1117
      %v1119 = vpop.f32.mrb[0].mxu0
      %v1120 = vpop.f32.mrb[0].mxu0
      %v1121 = vadd.f32 %v1009, %v1120
      %v1122 = vpop.f32.mrb[0].mxu0
      %1123 = vmatprep.mubr.bf16.mxu0 0
      %1124 = vmatmul.mubr.bf16.gmra.mrb[0].mxu0 %v980
      %v1125 = vpop.f32.mrb[0].mxu0
      %v1126 = vadd.f32 %v1009, %v1125
      %v1127 = vpop.f32.mrb[0].mxu0
      %v1128 = vpop.f32.mrb[0].mxu0
      %v1129 = vadd.f32 %v1009, %v1128
      %v1130 = vpop.f32.mrb[0].mxu0
      %1131 = vmatprep.mubr.bf16.mxu0 0
      %1132 = vmatmul.mubr.bf16.gmra.mrb[0].mxu0 %v981
      %v1133 = vpop.f32.mrb[0].mxu0
      %v1134 = vadd.f32 %v1009, %v1133
      %v1135 = vpop.f32.mrb[0].mxu0
      %v1136 = vpop.f32.mrb[0].mxu0
      %v1137 = vadd.f32 %v1009, %v1136
      %v1138 = vpop.f32.mrb[0].mxu0
      %1139 = vmatprep.mubr.bf16.mxu0 0
      %1140 = vmatmul.mubr.bf16.gmra.mrb[0].mxu0 %v982
      %v1141 = vpop.f32.mrb[0].mxu0
      %v1142 = vadd.f32 %v1009, %v1141
      %v1143 = vpop.f32.mrb[0].mxu0
      %v1144 = vpop.f32.mrb[0].mxu0
      %v1145 = vadd.f32 %v1009, %v1144
      %v1146 = vpop.f32.mrb[0].mxu0
      %1147 = vmatprep.mubr.bf16.mxu0 0
      %1148 = vmatmul.mubr.bf16.gmra.mrb[0].mxu0 %v983
      %v1149 = vpop.f32.mrb[0].mxu0
      %v1150 = vadd.f32 %v1009, %v1149
      %v1151 = vpop.f32.mrb[0].mxu0
      %v1152 = vpop.f32.mrb[0].mxu0
      %v1153 = vadd.f32 %v1009, %v1152
      %v1154 = vpop.f32.mrb[0].mxu0
      %1155 = vmatprep.mubr.bf16.mxu0 0
      %1156 = vmatmul.mubr.bf16.gmra.mrb[0].mxu0 %v984
      %v1157 = vpop.f32.mrb[0].mxu0
      %v1158 = vadd.f32 %v1009, %v1157
      %v1159 = vpop.f32.mrb[0].mxu0
      %v1160 = vpop.f32.mrb[0].mxu0
      %v1161 = vadd.f32 %v1009, %v1160
      %v1162 = vpop.f32.mrb[0].mxu0
      %1163 = vmatprep.mubr.bf16.mxu0 0
      %1164 = vmatmul.mubr.bf16.gmra.mrb[0].mxu0 %v985
      %v1165 = vpop.f32.mrb[0].mxu0
      %v1166 = vadd.f32 %v1009, %v1165
      %v1167 = vpop.f32.mrb[0].mxu0
      %v1168 = vpop.f32.mrb[0].mxu0
      %v1169 = vadd.f32 %v1009, %v1168
      %v1170 = vpop.f32.mrb[0].mxu0
      %1171 = vmatprep.mubr.bf16.mxu0 0
      %1172 = vmatmul.mubr.bf16.gmra.mrb[0].mxu0 %v986
      %v1173 = vpop.f32.mrb[0].mxu0
      %v1174 = vadd.f32 %v1009, %v1173
      %v1175 = vpop.f32.mrb[0].mxu0
      %v1176 = vpop.f32.mrb[0].mxu0
      %v1177 = vadd.f32 %v1009, %v1176
      %v1178 = vpop.f32.mrb[0].mxu0
      %1179 = vmatprep.mubr.bf16.mxu0 0
      %1180 = vmatmul.mubr.bf16.gmra.mrb[0].mxu0 %v987
      %v1181 = vpop.f32.mrb[0].mxu0
      %v1182 = vadd.f32 %v1009, %v1181
      %v1183 = vpop.f32.mrb[0].mxu0
      %v1184 = vpop.f32.mrb[0].mxu0
      %v1185 = vadd.f32 %v1009, %v1184
      %v1186 = vpop.f32.mrb[0].mxu0
      %1187 = vdwg.mxu0
      %v1188 = vmul.f32 %v1094, 0.5
      %v1189 = vmul.f32 %v1097, 0.5
      %v1190 = vmul.f32 %v1102, 0.5
      %v1191 = vmul.f32 %v1105, 0.5
      %v1192 = vmul.f32 %v1110, 0.5
      %v1193 = vmul.f32 %v1113, 0.5
      %v1194 = vmul.f32 %v1118, 0.5
      %v1195 = vmul.f32 %v1121, 0.5
      %v1196 = vmul.f32 %v1126, 0.5
      %v1197 = vmul.f32 %v1129, 0.5
      %v1198 = vmul.f32 %v1134, 0.5
      %v1199 = vmul.f32 %v1137, 0.5
      %v1200 = vmul.f32 %v1142, 0.5
      %v1201 = vmul.f32 %v1145, 0.5
      %v1202 = vmul.f32 %v1150, 0.5
      %v1203 = vmul.f32 %v1153, 0.5
      %v1204 = vmul.f32 %v1158, 0.5
      %v1205 = vmul.f32 %v1161, 0.5
      %v1206 = vmul.f32 %v1166, 0.5
      %v1207 = vmul.f32 %v1169, 0.5
      %v1208 = vmul.f32 %v1174, 0.5
      %v1209 = vmul.f32 %v1177, 0.5
      %v1210 = vmul.f32 %v1182, 0.5
      %v1211 = vmul.f32 %v1185, 0.5
      %v1212 = vtanh.pop %v1188
      %v1213 = vtanh.pop %v1189
      %v1214 = vtanh.pop %v1190
      %v1215 = vtanh.pop %v1191
      %v1216 = vtanh.pop %v1192
      %v1217 = vtanh.pop %v1193
      %v1218 = vtanh.pop %v1194
      %v1219 = vtanh.pop %v1195
      %v1220 = vtanh.pop %v1196
      %v1221 = vtanh.pop %v1197
      %v1222 = vtanh.pop %v1198
      %v1223 = vtanh.pop %v1199
      %v1224 = vtanh.pop %v1200
      %v1225 = vtanh.pop %v1201
      %v1226 = vtanh.pop %v1202
      %v1227 = vtanh.pop %v1203
      %v1228 = vtanh.pop %v1204
      %v1229 = vtanh.pop %v1205
      %v1230 = vtanh.pop %v1206
      %v1231 = vtanh.pop %v1207
      %v1232 = vtanh.pop %v1208
      %v1233 = vtanh.pop %v1209
      %v1234 = vtanh.pop %v1210
      %v1235 = vtanh.pop %v1211
      %v1236 = vmul.f32 %v1212, 0.5
      %v1237 = vmul.f32 %v1213, 0.5
      %v1238 = vmul.f32 %v1214, 0.5
      %v1239 = vmul.f32 %v1215, 0.5
      %v1240 = vmul.f32 %v1216, 0.5
      %v1241 = vmul.f32 %v1217, 0.5
      %v1242 = vmul.f32 %v1218, 0.5
      %v1243 = vmul.f32 %v1219, 0.5
      %v1244 = vmul.f32 %v1220, 0.5
      %v1245 = vmul.f32 %v1221, 0.5
      %v1246 = vmul.f32 %v1222, 0.5
      %v1247 = vmul.f32 %v1223, 0.5
      %v1248 = vmul.f32 %v1224, 0.5
      %v1249 = vmul.f32 %v1225, 0.5
      %v1250 = vmul.f32 %v1226, 0.5
      %v1251 = vmul.f32 %v1227, 0.5
      %v1252 = vmul.f32 %v1228, 0.5
      %v1253 = vmul.f32 %v1229, 0.5
      %v1254 = vmul.f32 %v1230, 0.5
      %v1255 = vmul.f32 %v1231, 0.5
      %v1256 = vmul.f32 %v1232, 0.5
      %v1257 = vmul.f32 %v1233, 0.5
      %v1258 = vmul.f32 %v1234, 0.5
      %v1259 = vmul.f32 %v1235, 0.5
      %v1260 = vadd.f32 %v1236, 0.5
      %v1261 = vadd.f32 %v1237, 0.5
      %v1262 = vadd.f32 %v1238, 0.5
      %v1263 = vadd.f32 %v1239, 0.5
      %v1264 = vadd.f32 %v1240, 0.5
      %v1265 = vadd.f32 %v1241, 0.5
      %v1266 = vadd.f32 %v1242, 0.5
      %v1267 = vadd.f32 %v1243, 0.5
      %v1268 = vadd.f32 %v1244, 0.5
      %v1269 = vadd.f32 %v1245, 0.5
      %v1270 = vadd.f32 %v1246, 0.5
      %v1271 = vadd.f32 %v1247, 0.5
      %v1272 = vadd.f32 %v1248, 0.5
      %v1273 = vadd.f32 %v1249, 0.5
      %v1274 = vadd.f32 %v1250, 0.5
      %v1275 = vadd.f32 %v1251, 0.5
      %v1276 = vadd.f32 %v1252, 0.5
      %v1277 = vadd.f32 %v1253, 0.5
      %v1278 = vadd.f32 %v1254, 0.5
      %v1279 = vadd.f32 %v1255, 0.5
      %v1280 = vadd.f32 %v1256, 0.5
      %v1281 = vadd.f32 %v1257, 0.5
      %v1282 = vadd.f32 %v1258, 0.5
      %v1283 = vadd.f32 %v1259, 0.5
      %vm1284 = vcmask 130048
      %1285 = vst.msk [vmem:[%s280] sm:$0xff] %vm1284, %v1260
      %1286 = vst.msk [vmem:[%s280 + $0x8] sm:$0xff] %vm1284, %v1261
      %1287 = vst.msk [vmem:[%s280 + $0x10] sm:$0xff] %vm1284, %v1262
      %1288 = vst.msk [vmem:[%s280 + $0x18] sm:$0xff] %vm1284, %v1263
      %1289 = vst.msk [vmem:[%s280 + $0x20] sm:$0xff] %vm1284, %v1264
      %1290 = vst.msk [vmem:[%s280 + $0x28] sm:$0xff] %vm1284, %v1265
      %1291 = vst.msk [vmem:[%s280 + $0x30] sm:$0xff] %vm1284, %v1266
      %1292 = vst.msk [vmem:[%s280 + $0x38] sm:$0xff] %vm1284, %v1267
      %1293 = vst.msk [vmem:[%s280 + $0x40] sm:$0xff] %vm1284, %v1268
      %1294 = vst.msk [vmem:[%s280 + $0x48] sm:$0xff] %vm1284, %v1269
      %1295 = vst.msk [vmem:[%s280 + $0x50] sm:$0xff] %vm1284, %v1270
      %1296 = vst.msk [vmem:[%s280 + $0x58] sm:$0xff] %vm1284, %v1271
      %1297 = vst.msk [vmem:[%s280 + $0x60] sm:$0xff] %vm1284, %v1272
      %1298 = vst.msk [vmem:[%s280 + $0x68] sm:$0xff] %vm1284, %v1273
      %1299 = vst.msk [vmem:[%s280 + $0x70] sm:$0xff] %vm1284, %v1274
      %1300 = vst.msk [vmem:[%s280 + $0x78] sm:$0xff] %vm1284, %v1275
      %1301 = vst.msk [vmem:[%s280 + $0x80] sm:$0xff] %vm1284, %v1276
      %1302 = vst.msk [vmem:[%s280 + $0x88] sm:$0xff] %vm1284, %v1277
      %1303 = vst.msk [vmem:[%s280 + $0x90] sm:$0xff] %vm1284, %v1278
      %1304 = vst.msk [vmem:[%s280 + $0x98] sm:$0xff] %vm1284, %v1279
      %1305 = vst.msk [vmem:[%s280 + $0xa0] sm:$0xff] %vm1284, %v1280
      %1306 = vst.msk [vmem:[%s280 + $0xa8] sm:$0xff] %vm1284, %v1281
      %1307 = vst.msk [vmem:[%s280 + $0xb0] sm:$0xff] %vm1284, %v1282
      %1308 = vst.msk [vmem:[%s280 + $0xb8] sm:$0xff] %vm1284, %v1283
      %s1309 = smul.u32 24, %s18
      %p1310 = scmp.lt.s32.totalorder %s1309, 47
      %s1311 = scalar_select %p1310, %s1309, 47
      %s1312 = smul.addr %s1311, 8
      %s1313 = scalar_lea.vmem %s7, %s1312
      // Predicated region
      $region49: #{mlp_forward.1} parent=47 // pred_check
        %p1314 = pneg %p188
      $region50: #{mlp_forward.1} parent=47 // pred_check_branch
        %1316 = sbr.rel (%p1314) target = $region52
      $region51: #{mlp_forward.1} parent=47 // pred_region
        %s1317 = smul.u32 24, %s18
      $region52: #{mlp_forward.1} parent=47 // pred_fallthru
        _
    $region48: #{mlp_forward.1} parent=5 // pred_fallthru
      _
    %p1318 = scmp.le.s32.totalorder 2, %s13
    // Predicated region
    $region53: #{mlp_forward.1} parent=5 // pred_check
      %p1319 = pneg %p1318
    $region54: #{mlp_forward.1} parent=5 // pred_check_branch
      %1321 = sbr.rel (%p1319) target = $region56
    $region55: #{mlp_forward.1} parent=5 // pred_region
      %s1322 = ssub.s32 %s13, 2
      // Predicated region
      $region57: #{mlp_forward.1} parent=55 // pred_check
        %p1323 = pneg %p194
      $region58: #{mlp_forward.1} parent=55 // pred_check_branch
        %1325 = sbr.rel (%p1323) target = $region60
      $region59: #{mlp_forward.1} parent=55 // pred_region
        %s1326 = smul.u32 24, %s19
        %p1327 = scmp.lt.s32.totalorder %s1326, 47
        %s1328 = scalar_select %p1327, %s1326, 47
        %s1329 = smul.addr %s1328, 8
        %s1330 = scalar_lea.vmem %s7, %s1329
      $region60: #{mlp_forward.1} parent=55 // pred_fallthru
        _
    $region56: #{mlp_forward.1} parent=5 // pred_fallthru
      _
  $region6: #{mlp_forward.1} parent=0 // loop_footer
    %s17 = sadd.s32 1, %s13
  $region7: #{mlp_forward.1} parent=0 // loop_footer_branch
    %12 = sbr.rel target = $region3
  $region8: #{mlp_forward.1} parent=0 // loop_exit
    _

</llo_original>
